<compile_context>
chip_gen: v7x
topology: tpu7x:2x2x1
jax: 0.10.0
libtpu: 0.0.40
codegen_flags: <defaults>
</compile_context>

<pallas_src>
import functools

import jax
import jax.numpy as jnp
from jax.experimental import pallas as pl
from jax.experimental.pallas import tpu as pltpu

LANE = 128
SUBLANE = 8
MAX_BLOCK_BYTES = 2 * 1024 * 1024      # per-input, per-step HBM tile
SPLIT_THRESHOLD_BYTES = 1024 * 1024    # split arrays >= this so grid >= 2 (v7x megacore)
VMEM_LIMIT_BYTES = 32 * 1024 * 1024    # explicit scoped-VMEM limit (v5e default is only 16 MiB)


def _cdiv(a, b):
    return -(-a // b)


def _round_up(v, m):
    return _cdiv(v, m) * m


def _mse_partial_kernel(x_ref, t_ref, partial_ref, *, block_rows, total_rows,
                        need_mask):
    """Per-block partial sum of squared differences -> (1, 8, 128) f32."""
    d = x_ref[...].astype(jnp.float32) - t_ref[...].astype(jnp.float32)
    sq = d * d

    def _write(vals):
        # (block_rows, 128) -> (block_rows//8, 8, 128) is a free reshape (no
        # tile crossing); the axis-0 sum is a tree of pure VPU vreg adds.
        acc = vals.reshape(block_rows // SUBLANE, SUBLANE, LANE).sum(axis=0)
        partial_ref[...] = acc.reshape(1, SUBLANE, LANE)

    if need_mask:
        # Only the LAST block can run past the array; confine the iota/cmp/
        # select to that single step so all other steps stay DMA-bound.
        i = pl.program_id(0)
        is_last = i == pl.num_programs(0) - 1

        @pl.when(jnp.logical_not(is_last))
        def _():
            _write(sq)

        @pl.when(is_last)
        def _():
            row_ids = (jax.lax.broadcasted_iota(jnp.int32, sq.shape, 0)
                       + i * block_rows)
            _write(jnp.where(row_ids < total_rows, sq, jnp.float32(0.0)))
    else:
        _write(sq)


def _sse_pallas(x2d, t2d):
    """Sum of squared differences over a (rows, 128) pair via Pallas."""
    rows = x2d.shape[0]
    itemsize = jnp.dtype(x2d.dtype).itemsize

    # Dtype-aware block sizing: ~MAX_BLOCK_BYTES of HBM per input per step.
    budget_rows = max(SUBLANE,
                      (MAX_BLOCK_BYTES // (LANE * itemsize)) // SUBLANE * SUBLANE)
    row_bytes = rows * LANE * itemsize
    if rows > budget_rows:
        block_rows = budget_rows
    elif row_bytes >= SPLIT_THRESHOLD_BYTES:
        # Fits in one block but is big enough that splitting in two lets the
        # v7x megacore shard the "parallel" axis across both TensorCores.
        block_rows = _round_up(_cdiv(rows, 2), SUBLANE)
    else:
        block_rows = _round_up(rows, SUBLANE)

    grid = _cdiv(rows, block_rows)
    need_mask = (grid * block_rows) != rows

    kernel = functools.partial(
        _mse_partial_kernel,
        block_rows=block_rows,
        total_rows=rows,
        need_mask=need_mask,
    )

    cost = pl.CostEstimate(
        flops=3 * rows * LANE,                      # sub, mul, add per element
        transcendentals=0,
        bytes_accessed=2 * rows * LANE * itemsize + grid * SUBLANE * LANE * 4,
    )

    partials = pl.pallas_call(
        kernel,
        out_shape=jax.ShapeDtypeStruct((grid, SUBLANE, LANE), jnp.float32),
        grid_spec=pltpu.PrefetchScalarGridSpec(
            num_scalar_prefetch=0,
            grid=(grid,),
            in_specs=[
                pl.BlockSpec((block_rows, LANE), lambda i: (i, 0)),
                pl.BlockSpec((block_rows, LANE), lambda i: (i, 0)),
            ],
            out_specs=pl.BlockSpec((1, SUBLANE, LANE), lambda i: (i, 0, 0)),
        ),
        compiler_params=pltpu.CompilerParams(
            dimension_semantics=("parallel",),       # independent blocks
            vmem_limit_bytes=VMEM_LIMIT_BYTES,
        ),
        cost_estimate=cost,
    )(x2d, t2d)

    return jnp.sum(partials)


def _content_loss_impl(x, target):
    """Returns (x, loss) with loss = mean((x - target)^2) over all elements."""
    assert x.shape == target.shape, "target_feature must match x shape"
    total = x.size

    xf = x.reshape(-1)
    tf = target.reshape(-1)

    main_rows = total // LANE
    main = main_rows * LANE
    rem = total - main

    sse = jnp.float32(0.0)
    if main:
        # Common case (total % 128 == 0): these are full-extent slices + free
        # reshapes, i.e. zero extra HBM traffic. Only a ragged tail (rare for
        # conv feature maps) copies the prefix instead of padding everything.
        x2d = xf[:main].reshape(main_rows, LANE)
        t2d = tf[:main].reshape(main_rows, LANE)
        sse = _sse_pallas(x2d, t2d)
    if rem:
        xr = xf[main:].astype(jnp.float32)
        tr = tf[main:].astype(jnp.float32)
        sse = sse + jnp.sum((xr - tr) ** 2)

    loss = sse / jnp.float32(total)
    # Module returns x unchanged (identity); loss is a side value.
    return x, loss


@jax.custom_vjp
def content_loss_forward(x, target):
    return _content_loss_impl(x, target)


def _content_loss_fwd(x, target):
    out = _content_loss_impl(x, target)
    return out, (x, target)


def _content_loss_bwd(res, cotangents):
    x, target = res
    g_x, g_loss = cotangents
    diff = x.astype(jnp.float32) - target.astype(jnp.float32)
    scale = (jnp.float32(2.0) / jnp.float32(x.size)) * g_loss
    dx = (g_x.astype(jnp.float32) + scale * diff).astype(x.dtype)
    dt = (-scale * diff).astype(target.dtype)
    return dx, dt


content_loss_forward.defvjp(_content_loss_fwd, _content_loss_bwd)


class ContentLoss:
    """JAX/Pallas analogue of the PyTorch ContentLoss module."""

    def __init__(self, target_feature):
        self.target = jax.lax.stop_gradient(target_feature)
        self.loss = None

    def __call__(self, x):
        # NOTE: the `self.loss` attribute mirrors the PyTorch module and only
        # works eagerly; under jit/scan use content_loss_forward's returned
        # loss explicitly.
        x_out, loss = content_loss_forward(x, self.target)
        self.loss = loss
        return x_out


if __name__ == "__main__":
    key = jax.random.PRNGKey(0)
    k1, k2, k3, k4, k5, k6 = jax.random.split(key, 6)

    # Test 1: small NCHW feature maps (single-block path) + gradient check.
    x = jax.random.normal(k1, (2, 4, 16, 16), dtype=jnp.float32)
    target = jax.random.normal(k2, (2, 4, 16, 16), dtype=jnp.float32)

    module = ContentLoss(target)
    out = jax.block_until_ready(module(x))
    loss = jax.block_until_ready(module.loss)

    ref_loss = jnp.mean((x - target) ** 2)
    assert out.shape == x.shape
    assert jnp.allclose(out, x)
    assert jnp.allclose(loss, ref_loss, rtol=1e-5, atol=1e-6)

    gx = jax.block_until_ready(
        jax.grad(lambda xx: content_loss_forward(xx, target)[1])(x))
    ref_gx = 2.0 * (x - target) / x.size
    assert jnp.allclose(gx, ref_gx, rtol=1e-5, atol=1e-7)

    # Test 2: bf16 inputs (in-kernel f32 cast, dtype-aware block sizing).
    xb = jax.random.normal(k3, (2, 8, 64, 64), dtype=jnp.bfloat16)
    tb = jax.random.normal(k4, (2, 8, 64, 64), dtype=jnp.bfloat16)
    mod_b = ContentLoss(tb)
    out_b = jax.block_until_ready(mod_b(xb))
    loss_b = jax.block_until_ready(mod_b.loss)
    ref_b = jnp.mean((xb.astype(jnp.float32) - tb.astype(jnp.float32)) ** 2)
    assert out_b.shape == xb.shape
    assert jnp.allclose(loss_b, ref_b, rtol=1e-5, atol=1e-6)

    # Test 3: multi-block grid (>= 2 steps), masked tail block, and a <128
    # element ragged remainder handled outside the kernel.
    xc = jax.random.normal(k5, (2, 9, 120, 124), dtype=jnp.float32)
    tc = jax.random.normal(k6, (2, 9, 120, 124), dtype=jnp.float32)
    mod_c = ContentLoss(tc)
    out_c = jax.block_until_ready(mod_c(xc))
    loss_c = jax.block_until_ready(mod_c.loss)
    ref_c = jnp.mean((xc - tc) ** 2)
    assert out_c.shape == xc.shape
    assert jnp.allclose(out_c, xc)
    assert jnp.allclose(loss_c, ref_c, rtol=1e-4, atol=1e-6)

    print("KERNEL_OK")
</pallas_src>

<mosaic_0001>
module attributes {stable_mosaic.version = 11 : i64} {
  func.func @_mse_partial_kernel(%arg0: i32, %arg1: memref<16x128xf32, #tpu.memory_space<vmem>>, %arg2: memref<16x128xf32, #tpu.memory_space<vmem>>, %arg3: memref<1x8x128xf32, #tpu.memory_space<vmem>>) attributes {dimension_semantics = [#tpu.dimension_semantics<parallel>], iteration_bounds = array<i64: 1>, scalar_prefetch = 0 : i64, scratch_operands = 0 : i64, tpu.core_type = #tpu.core_type<tc>, window_params = [{transform_indices = @transform_0, window_bounds = array<i64: 16, 128>}, {transform_indices = @transform_1, window_bounds = array<i64: 16, 128>}, {transform_indices = @transform_2, window_bounds = array<i64: 1, 8, 128>}]} {
    %c0 = arith.constant 0 : index
    %c0_0 = arith.constant 0 : index
    %0 = vector.load %arg1[%c0, %c0_0] : memref<16x128xf32, #tpu.memory_space<vmem>>, vector<16x128xf32>
    %c0_1 = arith.constant 0 : index
    %c0_2 = arith.constant 0 : index
    %1 = vector.load %arg2[%c0_1, %c0_2] : memref<16x128xf32, #tpu.memory_space<vmem>>, vector<16x128xf32>
    %2 = arith.subf %0, %1 : vector<16x128xf32>
    %3 = arith.mulf %2, %2 : vector<16x128xf32>
    %4 = vector.shape_cast %3 : vector<16x128xf32> to vector<2x8x128xf32>
    %cst = arith.constant dense<0.000000e+00> : vector<8x128xf32>
    %5 = vector.multi_reduction <add>, %4, %cst [0] : vector<2x8x128xf32> to vector<8x128xf32>
    %6 = vector.shape_cast %5 : vector<8x128xf32> to vector<1x8x128xf32>
    %c0_3 = arith.constant 0 : index
    %c0_4 = arith.constant 0 : index
    %c0_5 = arith.constant 0 : index
    %7 = vector.load %arg3[%c0_3, %c0_4, %c0_5] : memref<1x8x128xf32, #tpu.memory_space<vmem>>, vector<1x8x128xf32>
    tpu.vector_store %arg3[%c0_3, %c0_4, %c0_5], %6 {strides = array<i32>} : memref<1x8x128xf32, #tpu.memory_space<vmem>>, vector<1x8x128xf32>,
    return
  }
  func.func @transform_0(%arg0: i32) -> (i32, i32) {
    %c0_i32 = arith.constant 0 : i32
    %c0_i32_0 = arith.constant 0 : i32
    return %arg0, %c0_i32 : i32, i32
  }
  func.func @transform_1(%arg0: i32) -> (i32, i32) {
    %c0_i32 = arith.constant 0 : i32
    %c0_i32_0 = arith.constant 0 : i32
    return %arg0, %c0_i32 : i32, i32
  }
  func.func @transform_2(%arg0: i32) -> (i32, i32, i32) {
    %c0_i32 = arith.constant 0 : i32
    %c0_i32_0 = arith.constant 0 : i32
    %c0_i32_1 = arith.constant 0 : i32
    return %arg0, %c0_i32, %c0_i32_0 : i32, i32, i32
  }
}

</mosaic_0001>

<llo_original>
// kernel: tpu_custom_call.1
$region0: #{tpu_custom_call.1}
  #allocation0 [shape = 'u32[]', space=smem, size = 0x4, offset = 0x4, fixed_abs, tag = 'smem constant byte address 0x4 - core index']
  #allocation1 [shape = 'u32[144,128]{1,0:T(1,128)}', space=vmem, size = 0x12000, scoped, tag = 'internal scratch']
  %s0 = inlined_call_operand.hbm [shape: f32[16,128], index: 0, kind: input, shape index: {}]
  %s1 = inlined_call_operand.hbm [shape: f32[16,128], index: 1, kind: input, shape index: {}]
  %s2 = inlined_call_operand.hbm [shape: f32[1,8,128], index: 2, kind: output, shape index: {}]
  %s3 = sld [smem:[#allocation0]]
  $region26: #{tpu_custom_call.1} parent=0
    _
  %s5 = ssub.s32 1, %s3
  %s6 = scalar_select 0, %s5, %s3
  $region1: #{tpu_custom_call.1} parent=0
    #allocation2 [shape = 'u8[8192]{0}', space=vmem, size = 0x2000, scoped, tag = 'input window, operand 0, single buffered']
    #allocation3 [shape = 's32[1]{0}', space=sflag, size = 0x4, scoped, tag = 'scoped memory for tpu_custom_call.1']
    #allocation4 [shape = 's32[1]{0}', space=sflag, size = 0x4, scoped, tag = 'scoped memory for tpu_custom_call.1']
    #allocation5 [shape = 'u8[8192]{0}', space=vmem, size = 0x2000, scoped, tag = 'input window, operand 1, single buffered']
    #allocation6 [shape = 's32[1]{0}', space=sflag, size = 0x4, scoped, tag = 'scoped memory for tpu_custom_call.1']
    #allocation7 [shape = 'u8[4096]{0}', space=vmem, size = 0x1000, scoped, tag = 'output window, operand 0, single buffered']
    %7 = vsyncpa [#allocation3], 0
    %8 = vsyncpa [#allocation6], 0
    %9 = vsyncpa [#allocation4], 0
    // Predicated region
    $region2: #{tpu_custom_call.1} parent=1 // pred_check
      _
    $region3: #{tpu_custom_call.1} parent=1 // pred_check_branch
      %11 = sbr.rel (0) target = $region5
    $region4: #{tpu_custom_call.1} parent=1 // pred_region
      %s13 = ssub.s32 256, 256
      %14 = vsyncadd [#allocation3], %s13
      %s15 = sshll.u32 [#allocation2], 4
      %s16 = int_to_ptr.vmem [resolvable:$true] %s15
      %21 = dma.hbm_to_vmem [thread:$0]  %s0, 256, %s16, [#allocation3], 128, 128, 8
    $region5: #{tpu_custom_call.1} parent=1 // pred_fallthru
      _
    // Predicated region
    $region6: #{tpu_custom_call.1} parent=1 // pred_check
      _
    $region7: #{tpu_custom_call.1} parent=1 // pred_check_branch
      %23 = sbr.rel (0) target = $region9
    $region8: #{tpu_custom_call.1} parent=1 // pred_region
      %s25 = ssub.s32 256, 256
      %26 = vsyncadd [#allocation6], %s25
      %s27 = sshll.u32 [#allocation5], 4
      %s28 = int_to_ptr.vmem [resolvable:$true] %s27
      %33 = dma.hbm_to_vmem [thread:$0]  %s1, 256, %s28, [#allocation6], 128, 128, 8
    $region9: #{tpu_custom_call.1} parent=1 // pred_fallthru
      _
    // Predicated region
    $region10: #{tpu_custom_call.1} parent=1 // pred_check
      _
    $region11: #{tpu_custom_call.1} parent=1 // pred_check_branch
      %35 = sbr.rel (0) target = $region13
    $region12: #{tpu_custom_call.1} parent=1 // pred_region
      %36 = dma.done [#allocation3], 256
    $region13: #{tpu_custom_call.1} parent=1 // pred_fallthru
      _
    // Predicated region
    $region14: #{tpu_custom_call.1} parent=1 // pred_check
      _
    $region15: #{tpu_custom_call.1} parent=1 // pred_check_branch
      %38 = sbr.rel (0) target = $region17
    $region16: #{tpu_custom_call.1} parent=1 // pred_region
      %39 = dma.done [#allocation6], 256
    $region17: #{tpu_custom_call.1} parent=1 // pred_fallthru
      _
    %v40 = vld [vmem:[#allocation2] sm:$0xff]
    %v41 = vld [vmem:[#allocation2 + $0x8] sm:$0xff]
    %v42 = vld [vmem:[#allocation5] sm:$0xff]
    %v43 = vld [vmem:[#allocation5 + $0x8] sm:$0xff]
    %v44 = vsub.f32 %v40, %v42
    %v45 = vsub.f32 %v41, %v43
    %v46 = vmul.f32 %v44, %v44
    %v47 = vmul.f32 %v45, %v45
    %v48 = vadd.f32 %v46, %v47
    %49 = vst [vmem:[#allocation7] sm:$0xff] %v48
    // Predicated region
    $region18: #{tpu_custom_call.1} parent=1 // pred_check
      _
    $region19: #{tpu_custom_call.1} parent=1 // pred_check_branch
      %51 = sbr.rel (0) target = $region21
    $region20: #{tpu_custom_call.1} parent=1 // pred_region
      %s53 = ssub.s32 128, 128
      %54 = vsyncadd [#allocation4], %s53
      %s56 = sshll.u32 [#allocation7], 4
      %s57 = int_to_ptr.vmem [resolvable:$true] %s56
      %59 = dma.vmem_to_hbm [thread:$0]  %s57, 128, %s2, [#allocation4]
    $region21: #{tpu_custom_call.1} parent=1 // pred_fallthru
      _
    // Predicated region
    $region22: #{tpu_custom_call.1} parent=1 // pred_check
      _
    $region23: #{tpu_custom_call.1} parent=1 // pred_check_branch
      %61 = sbr.rel (0) target = $region25
    $region24: #{tpu_custom_call.1} parent=1 // pred_region
      %62 = dma.done [#allocation4], 128
    $region25: #{tpu_custom_call.1} parent=1 // pred_fallthru
      _
    %63 = vsyncpa [#allocation3], 1
    %64 = vsyncpa [#allocation6], 1
    %65 = vsyncpa [#allocation4], 1

</llo_original>
